<compile_context>
chip_gen: v5e
topology: v5e:2x2
jax: 0.10.0
libtpu: 0.0.40
codegen_flags: <defaults>
</compile_context>

<pallas_src>
import functools
import math

import jax
import jax.numpy as jnp
from jax.experimental import pallas as pl
from jax.experimental.pallas import tpu as pltpu


# ---------------------------------------------------------------------------
# Pallas kernels: partial-OT ("causal") attention
# ---------------------------------------------------------------------------
def _attn_kernel_stream(q_ref, k_ref, v_ref, o_ref, m_ref, l_ref, acc_ref, *,
                        scale, matmul_dtype):
    """KV-streamed variant (grid axis 2 iterates over KV tiles)."""
    kv = pl.program_id(2)

    @pl.when(kv == 0)
    def _():
        m_ref[...] = jnp.full_like(m_ref, -jnp.inf)
        l_ref[...] = jnp.zeros_like(l_ref)
        acc_ref[...] = jnp.zeros_like(acc_ref)

    # Pre-scale q by 1/sqrt(d_k): O(Sq*d_k) multiplies instead of O(Sq*Sk).
    q = (q_ref[...] * scale).astype(matmul_dtype)           # (Hc, Sq, dk)
    k = k_ref[...].astype(matmul_dtype)                     # (Hc, Sk, dk)

    # scores: contract last dims of both operands (no explicit k^T relayout).
    s = jnp.einsum("bqd,bkd->bqk", q, k,
                   preferred_element_type=jnp.float32)      # (Hc, Sq, Sk) f32

    m_prev = m_ref[...]
    m_new = jnp.maximum(m_prev, jnp.max(s, axis=-1, keepdims=True))
    alpha = jnp.exp(m_prev - m_new)                         # (Hc, Sq, 1)
    p = jnp.exp(s - m_new)                                  # (Hc, Sq, Sk) f32

    l_ref[...] = alpha * l_ref[...] + jnp.sum(p, axis=-1, keepdims=True)
    acc_ref[...] = alpha * acc_ref[...] + jnp.einsum(
        "bqk,bkd->bqd", p.astype(matmul_dtype), v_ref[...].astype(matmul_dtype),
        preferred_element_type=jnp.float32)
    m_ref[...] = m_new

    @pl.when(kv == pl.num_programs(2) - 1)
    def _():
        # Partial-OT denominator: den = max(sum_exp, exp(-global_row_max)),
        # applied once per row at the end (exact for the streamed accumulation).
        den = jnp.maximum(l_ref[...], jnp.exp(-m_ref[...]))
        inv_den = pl.reciprocal(den, approx=False)
        o_ref[...] = (acc_ref[...] * inv_den).astype(o_ref.dtype)


def _attn_kernel_single(q_ref, k_ref, v_ref, o_ref, *, scale, matmul_dtype):
    """Single-pass variant: full KV extent in one tile -> no scratch/rescaling."""
    q = (q_ref[...] * scale).astype(matmul_dtype)           # (Hc, Sq, dk)
    k = k_ref[...].astype(matmul_dtype)                     # (Hc, S, dk)

    s = jnp.einsum("bqd,bkd->bqk", q, k,
                   preferred_element_type=jnp.float32)      # (Hc, Sq, S) f32

    m = jnp.max(s, axis=-1, keepdims=True)                  # (Hc, Sq, 1)
    p = jnp.exp(s - m)                                      # (Hc, Sq, S)
    den = jnp.maximum(jnp.sum(p, axis=-1, keepdims=True), jnp.exp(-m))
    inv_den = pl.reciprocal(den, approx=False)

    out = jnp.einsum("bqk,bkd->bqd",
                     p.astype(matmul_dtype), v_ref[...].astype(matmul_dtype),
                     preferred_element_type=jnp.float32)    # (Hc, Sq, dk)
    o_ref[...] = (out * inv_den).astype(o_ref.dtype)


# ---------------------------------------------------------------------------
# Tile planning helpers
# ---------------------------------------------------------------------------
def _pick_seq_tile(s, target):
    """Largest multiple of 8 <= target that divides s, else the full extent."""
    if s <= target or s % 8 != 0:
        return s
    t = min(target, s)
    t -= t % 8
    while t >= 8:
        if s % t == 0:
            return t
        t -= 8
    return s


def _vmem_bytes(hc, sq, sk, dk, in_itemsize):
    """Rough per-step VMEM footprint (double-buffered I/O + scratch + live temps)."""
    lane, sub = 128, 8
    dk_p = ((dk + lane - 1) // lane) * lane
    sq_p = ((sq + sub - 1) // sub) * sub
    sk_p = ((sk + sub - 1) // sub) * sub
    qb = hc * sq_p * dk_p * in_itemsize
    kb = hc * sk_p * dk_p * in_itemsize
    vb = kb
    ob = hc * sq_p * dk_p * 4
    scratch = hc * sq_p * (dk_p + 2 * lane) * 4          # acc + m + l (f32)
    temps = 2 * hc * sq_p * sk_p * 4                     # scores + p
    return 2 * (qb + kb + vb + ob) + scratch + temps


def _pick_head_block(bh, sq, sk, dk, in_itemsize, budget):
    best = 1
    for hc in range(1, bh + 1):
        if bh % hc == 0 and _vmem_bytes(hc, sq, sk, dk, in_itemsize) <= budget:
            best = hc
    return best


# ---------------------------------------------------------------------------
# pallas_call wrapper
# ---------------------------------------------------------------------------
def causal_attention_pallas(q, k, v, d_k, *, sq_target=512, sk_target=512,
                            vmem_budget_bytes=12 * 1024 * 1024):
    """q, k, v: (BH, S, d_k) arrays (f32 or bf16). Returns (BH, S, d_k) float32."""
    BH, S, dk = q.shape
    assert k.shape == (BH, S, dk) and v.shape == (BH, S, dk)
    matmul_dtype = q.dtype
    scale = 1.0 / math.sqrt(float(d_k))

    sq_t = _pick_seq_tile(S, sq_target)
    sk_t = _pick_seq_tile(S, sk_target)
    hc = _pick_head_block(BH, sq_t, sk_t, dk, q.dtype.itemsize, vmem_budget_bytes)

    n_kv = S // sk_t

    vmem_est = _vmem_bytes(hc, sq_t, sk_t, dk, q.dtype.itemsize)
    vmem_limit = int(min(48 * 1024 * 1024, max(16 * 1024 * 1024, 2 * vmem_est)))

    cost = pl.CostEstimate(
        flops=int(4 * BH * S * S * dk),               # q@k^T and p@v
        transcendentals=int(BH * S * S),              # exp of the score matrix
        bytes_accessed=int((3 * q.dtype.itemsize + 4) * BH * S * dk),
    )

    if n_kv == 1:
        # Single-pass kernel: full KV extent per step, no scratch, fully parallel.
        kernel = functools.partial(_attn_kernel_single, scale=scale,
                                   matmul_dtype=matmul_dtype)
        grid = (BH // hc, S // sq_t)
        q_spec = pl.BlockSpec((hc, sq_t, dk), lambda b, i: (b, i, 0))
        kv_spec = pl.BlockSpec((hc, S, dk), lambda b, i: (b, 0, 0))
        o_spec = pl.BlockSpec((hc, sq_t, dk), lambda b, i: (b, i, 0))
        grid_spec = pltpu.PrefetchScalarGridSpec(
            num_scalar_prefetch=0,
            grid=grid,
            in_specs=[q_spec, kv_spec, kv_spec],
            out_specs=o_spec,
        )
        dim_sem = ("parallel", "parallel")
    else:
        # KV-streamed kernel with flash-style online accumulation.
        kernel = functools.partial(_attn_kernel_stream, scale=scale,
                                   matmul_dtype=matmul_dtype)
        grid = (BH // hc, S // sq_t, n_kv)
        q_spec = pl.BlockSpec((hc, sq_t, dk), lambda b, i, j: (b, i, 0))
        kv_spec = pl.BlockSpec((hc, sk_t, dk), lambda b, i, j: (b, j, 0))
        o_spec = pl.BlockSpec((hc, sq_t, dk), lambda b, i, j: (b, i, 0))
        grid_spec = pltpu.PrefetchScalarGridSpec(
            num_scalar_prefetch=0,
            grid=grid,
            in_specs=[q_spec, kv_spec, kv_spec],
            out_specs=o_spec,
            scratch_shapes=[
                pltpu.VMEM((hc, sq_t, 1), jnp.float32),    # running row max m
                pltpu.VMEM((hc, sq_t, 1), jnp.float32),    # running row sum l
                pltpu.VMEM((hc, sq_t, dk), jnp.float32),   # unnormalized accumulator
            ],
        )
        dim_sem = ("parallel", "parallel", "arbitrary")

    return pl.pallas_call(
        kernel,
        out_shape=jax.ShapeDtypeStruct((BH, S, dk), jnp.float32),
        grid_spec=grid_spec,
        compiler_params=pltpu.CompilerParams(
            dimension_semantics=dim_sem,
            vmem_limit_bytes=vmem_limit,
        ),
        cost_estimate=cost,
    )(q, k, v)


# ---------------------------------------------------------------------------
# MultiHeadAttention module (forward only), parameters built deterministically
# ---------------------------------------------------------------------------
class MultiHeadAttentionPallas:
    def __init__(self, d_model, num_heads, max_seq_length, key,
                 dim_key=None, attn_type="causal", cost_type="dot_product"):
        assert attn_type == "causal" and cost_type == "dot_product"
        # TODO(synk): l2 / standard / linear / causal_fixed variants and mask support
        # are not wired into the kernel (only the module defaults are implemented).
        self.d_model = d_model
        self.num_heads = num_heads
        self.dim_latent = num_heads * dim_key if dim_key is not None else d_model
        assert self.dim_latent % num_heads == 0
        self.d_k = self.dim_latent // num_heads

        keys = jax.random.split(key, 8)
        bound_in = 1.0 / math.sqrt(d_model)
        bound_lat = 1.0 / math.sqrt(self.dim_latent)

        def lin(kw, kb, shape_w, shape_b, bound):
            w = jax.random.uniform(kw, shape_w, jnp.float32, -bound, bound)
            b = jax.random.uniform(kb, shape_b, jnp.float32, -bound, bound)
            return w, b

        # weights stored as (in_features, out_features) for x @ W + b
        self.w_q, self.b_q = lin(keys[0], keys[1], (d_model, self.dim_latent),
                                 (self.dim_latent,), bound_in)
        self.w_k, self.b_k = lin(keys[2], keys[3], (d_model, self.dim_latent),
                                 (self.dim_latent,), bound_in)
        self.w_v, self.b_v = lin(keys[4], keys[5], (d_model, self.dim_latent),
                                 (self.dim_latent,), bound_in)
        self.w_o, self.b_o = lin(keys[6], keys[7], (self.dim_latent, d_model),
                                 (d_model,), bound_lat)

    def _split_heads(self, x):
        # (B, S, dim_latent) -> (B, H, S, d_k)
        B, S, _ = x.shape
        return x.reshape(B, S, self.num_heads, self.d_k).transpose(0, 2, 1, 3)

    def _combine_heads(self, x):
        # (B, H, S, d_k) -> (B, S, dim_latent)
        B, H, S, dk = x.shape
        return x.transpose(0, 2, 1, 3).reshape(B, S, H * dk)

    def __call__(self, queries, keys, values, mask=None, matmul_dtype=jnp.float32):
        assert mask is None  # TODO(synk): masking not implemented in the kernel
        B, S, _ = queries.shape
        H, dk = self.num_heads, self.d_k

        q = self._split_heads(queries @ self.w_q + self.b_q)   # (B, H, S, dk)
        k = self._split_heads(keys @ self.w_k + self.b_k)      # (B, H, S, dk)
        v = self._split_heads(values @ self.w_v + self.b_v)    # (B, H, S, dk)

        # TODO(synk): for d_k >= 128 the head split/combine transposes could be folded
        # into the BlockSpec index_map on a (B, S, H*d_k) layout; with d_k < 128 the
        # (8,128) lane constraint forbids that, so keep the explicit reshape here.
        qf = q.reshape(B * H, S, dk).astype(matmul_dtype)
        kf = k.reshape(B * H, S, dk).astype(matmul_dtype)
        vf = v.reshape(B * H, S, dk).astype(matmul_dtype)

        attn_out = causal_attention_pallas(qf, kf, vf, self.d_k)     # (B*H, S, dk) f32
        attn_out = attn_out.reshape(B, H, S, dk)

        out = self._combine_heads(attn_out) @ self.w_o + self.b_o    # (B, S, d_model)
        return out


# ---------------------------------------------------------------------------
# Pure-JAX references (mirror the PyTorch semantics) for sanity checks
# ---------------------------------------------------------------------------
def _reference_attn(q, k, v, d_k):
    # q, k, v: (..., S, dk)
    scores = jnp.einsum("...qd,...kd->...qk", q, k) / math.sqrt(d_k)
    max_val = jnp.max(scores, axis=-1, keepdims=True)
    p = jnp.exp(scores - max_val)
    den = jnp.maximum(jnp.sum(p, axis=-1, keepdims=True), jnp.exp(-max_val))
    return jnp.einsum("...qk,...kd->...qd", p / den, v)


def _reference(mha, queries, keys, values):
    q = mha._split_heads(queries @ mha.w_q + mha.b_q)
    k = mha._split_heads(keys @ mha.w_k + mha.b_k)
    v = mha._split_heads(values @ mha.w_v + mha.b_v)
    ao = _reference_attn(q, k, v, mha.d_k)
    return mha._combine_heads(ao) @ mha.w_o + mha.b_o


if __name__ == "__main__":
    B, S, d_model, num_heads = 2, 8, 32, 4

    root = jax.random.PRNGKey(0)
    k_param, k_q, k_k, k_v, k_big = jax.random.split(root, 5)

    mha = MultiHeadAttentionPallas(d_model, num_heads, max_seq_length=S, key=k_param)

    queries = jax.random.normal(k_q, (B, S, d_model), jnp.float32)
    keys = jax.random.normal(k_k, (B, S, d_model), jnp.float32)
    values = jax.random.normal(k_v, (B, S, d_model), jnp.float32)

    # f32 path (single-pass kernel; tight correctness check vs pure-JAX reference).
    out = mha(queries, keys, values)
    jax.block_until_ready(out)

    ref = _reference(mha, queries, keys, values)
    assert out.shape == (B, S, d_model)
    assert jnp.allclose(out, ref, atol=1e-4, rtol=1e-4), "f32 mismatch vs reference"

    # bf16 matmul path (production config for v6e/v7x MXU); loose check only.
    out_bf16 = mha(queries, keys, values, matmul_dtype=jnp.bfloat16)
    jax.block_until_ready(out_bf16)
    assert out_bf16.shape == (B, S, d_model)
    assert bool(jnp.isfinite(out_bf16).all())
    assert jnp.allclose(out_bf16, ref, atol=1e-1, rtol=1e-1), "bf16 path diverged"

    # Exercise the KV-streamed kernel (multiple KV tiles) directly at a larger S.
    BH2, S2, dk2 = 2, 256, 64
    kq, kk, kv = jax.random.split(k_big, 3)
    q2 = jax.random.normal(kq, (BH2, S2, dk2), jnp.float32)
    k2 = jax.random.normal(kk, (BH2, S2, dk2), jnp.float32)
    v2 = jax.random.normal(kv, (BH2, S2, dk2), jnp.float32)
    out2 = causal_attention_pallas(q2, k2, v2, dk2, sq_target=128, sk_target=128)
    jax.block_until_ready(out2)
    ref2 = _reference_attn(q2, k2, v2, dk2)
    assert jnp.allclose(out2, ref2, atol=1e-4, rtol=1e-4), "streamed kernel mismatch"

    print("KERNEL_OK")
</pallas_src>

<mosaic_0001>
module attributes {stable_mosaic.version = 11 : i64} {
  func.func @_attn_kernel_single(%arg0: i32, %arg1: i32, %arg2: memref<8x8x8xf32, #tpu.memory_space<vmem>>, %arg3: memref<8x8x8xf32, #tpu.memory_space<vmem>>, %arg4: memref<8x8x8xf32, #tpu.memory_space<vmem>>, %arg5: memref<8x8x8xf32, #tpu.memory_space<vmem>>) attributes {dimension_semantics = [#tpu.dimension_semantics<parallel>, #tpu.dimension_semantics<parallel>], iteration_bounds = array<i64: 1, 1>, scalar_prefetch = 0 : i64, scratch_operands = 0 : i64, tpu.core_type = #tpu.core_type<tc>, window_params = [{transform_indices = @transform_0, window_bounds = array<i64: 8, 8, 8>}, {transform_indices = @transform_1, window_bounds = array<i64: 8, 8, 8>}, {transform_indices = @transform_2, window_bounds = array<i64: 8, 8, 8>}, {transform_indices = @transform_3, window_bounds = array<i64: 8, 8, 8>}]} {
    %c0 = arith.constant 0 : index
    %c0_0 = arith.constant 0 : index
    %c0_1 = arith.constant 0 : index
    %0 = vector.load %arg2[%c0, %c0_0, %c0_1] : memref<8x8x8xf32, #tpu.memory_space<vmem>>, vector<8x8x8xf32>
    %cst = arith.constant 0.353553385 : f32
    %1 = vector.broadcast %cst : f32 to vector<8x8x8xf32>
    %2 = arith.mulf %0, %1 : vector<8x8x8xf32>
    %c0_2 = arith.constant 0 : index
    %c0_3 = arith.constant 0 : index
    %c0_4 = arith.constant 0 : index
    %3 = vector.load %arg3[%c0_2, %c0_3, %c0_4] : memref<8x8x8xf32, #tpu.memory_space<vmem>>, vector<8x8x8xf32>
    "tpu.trace_start"() <{level = 10 : i32, message = "bqd,bkd->bqk"}> : () -> ()
    %cst_5 = arith.constant dense<0.000000e+00> : vector<8x8x8xf32>
    %4 = tpu.matmul %2, %3, %cst_5 {dimension_numbers = #tpu.dot_dimension_numbers<[2], [2], [1], [1], [0, 0, 0, 1, 1, 1], [0], [0]>} : vector<8x8x8xf32>, vector<8x8x8xf32>, vector<8x8x8xf32> -> vector<8x8x8xf32>
    "tpu.trace_stop"() : () -> ()
    %cst_6 = arith.constant dense<0xFF800000> : vector<8x8xf32>
    %5 = vector.multi_reduction <maximumf>, %4, %cst_6 [2] : vector<8x8x8xf32> to vector<8x8xf32>
    %6 = vector.shape_cast %5 : vector<8x8xf32> to vector<8x8x1xf32>
    %7 = vector.broadcast %6 : vector<8x8x1xf32> to vector<8x8x8xf32>
    %8 = arith.subf %4, %7 : vector<8x8x8xf32>
    %9 = math.exp %8 : vector<8x8x8xf32>
    %cst_7 = arith.constant dense<0.000000e+00> : vector<8x8xf32>
    %10 = vector.multi_reduction <add>, %9, %cst_7 [2] : vector<8x8x8xf32> to vector<8x8xf32>
    %11 = vector.shape_cast %10 : vector<8x8xf32> to vector<8x8x1xf32>
    %cst_8 = arith.constant 0.000000e+00 : f32
    %12 = vector.broadcast %cst_8 : f32 to vector<8x8x1xf32>
    %13 = arith.subf %12, %6 : vector<8x8x1xf32>
    %14 = math.exp %13 : vector<8x8x1xf32>
    %15 = arith.maximumf %11, %14 : vector<8x8x1xf32>
    %16 = tpu.reciprocal %15 : vector<8x8x1xf32> -> vector<8x8x1xf32>
    %c0_9 = arith.constant 0 : index
    %c0_10 = arith.constant 0 : index
    %c0_11 = arith.constant 0 : index
    %17 = vector.load %arg4[%c0_9, %c0_10, %c0_11] : memref<8x8x8xf32, #tpu.memory_space<vmem>>, vector<8x8x8xf32>
    "tpu.trace_start"() <{level = 10 : i32, message = "bqk,bkd->bqd"}> : () -> ()
    %cst_12 = arith.constant dense<0.000000e+00> : vector<8x8x8xf32>
    %18 = tpu.matmul %9, %17, %cst_12 {dimension_numbers = #tpu.dot_dimension_numbers<[2], [1], [1], [2], [0, 0, 0, 1, 1, 2], [0], [0]>} : vector<8x8x8xf32>, vector<8x8x8xf32>, vector<8x8x8xf32> -> vector<8x8x8xf32>
    "tpu.trace_stop"() : () -> ()
    %19 = vector.broadcast %16 : vector<8x8x1xf32> to vector<8x8x8xf32>
    %20 = arith.mulf %18, %19 : vector<8x8x8xf32>
    %c0_13 = arith.constant 0 : index
    %c0_14 = arith.constant 0 : index
    %c0_15 = arith.constant 0 : index
    %21 = vector.load %arg5[%c0_13, %c0_14, %c0_15] : memref<8x8x8xf32, #tpu.memory_space<vmem>>, vector<8x8x8xf32>
    tpu.vector_store %arg5[%c0_13, %c0_14, %c0_15], %20 {strides = array<i32>} : memref<8x8x8xf32, #tpu.memory_space<vmem>>, vector<8x8x8xf32>,
    return
  }
  func.func @transform_0(%arg0: i32, %arg1: i32) -> (i32, i32, i32) {
    %c0_i32 = arith.constant 0 : i32
    %c0_i32_0 = arith.constant 0 : i32
    return %arg0, %arg1, %c0_i32 : i32, i32, i32
  }
  func.func @transform_1(%arg0: i32, %arg1: i32) -> (i32, i32, i32) {
    %c0_i32 = arith.constant 0 : i32
    %c0_i32_0 = arith.constant 0 : i32
    %c0_i32_1 = arith.constant 0 : i32
    return %arg0, %c0_i32, %c0_i32_0 : i32, i32, i32
  }
  func.func @transform_2(%arg0: i32, %arg1: i32) -> (i32, i32, i32) {
    %c0_i32 = arith.constant 0 : i32
    %c0_i32_0 = arith.constant 0 : i32
    %c0_i32_1 = arith.constant 0 : i32
    return %arg0, %c0_i32, %c0_i32_0 : i32, i32, i32
  }
  func.func @transform_3(%arg0: i32, %arg1: i32) -> (i32, i32, i32) {
    %c0_i32 = arith.constant 0 : i32
    %c0_i32_0 = arith.constant 0 : i32
    return %arg0, %arg1, %c0_i32 : i32, i32, i32
  }
}

</mosaic_0001>

<llo_original>
// kernel: tpu_custom_call.1
$region0: #{tpu_custom_call.1}
  #allocation0 [shape = 'u32[]', space=smem, size = 0x4, offset = 0x4, fixed_abs, tag = 'smem constant byte address 0x4 - core index']
  #allocation1 [shape = 'u32[72,128]{1,0:T(1,128)}', space=vmem, size = 0x9000, scoped, tag = 'internal scratch']
  %s0 = inlined_call_operand.hbm [shape: f32[8,8,8], index: 0, kind: input, shape index: {}]
  %s1 = inlined_call_operand.hbm [shape: f32[8,8,8], index: 1, kind: input, shape index: {}]
  %s2 = inlined_call_operand.hbm [shape: f32[8,8,8], index: 2, kind: input, shape index: {}]
  %s3 = inlined_call_operand.hbm [shape: f32[8,8,8], index: 3, kind: output, shape index: {}]
  %s4 = sld [smem:[#allocation0]]
  $region34: #{tpu_custom_call.1} parent=0
    _
  %s6 = ssub.s32 1, %s4
  %s7 = scalar_select 0, %s6, %s4
  $region1: #{tpu_custom_call.1} parent=0
    #allocation2 [shape = 'u8[32768]{0}', space=vmem, size = 0x8000, scoped, tag = 'input window, operand 0, single buffered']
    #allocation3 [shape = 's32[1]{0}', space=sflag, size = 0x4, scoped, tag = 'scoped memory for tpu_custom_call.1']
    #allocation4 [shape = 's32[1]{0}', space=sflag, size = 0x4, scoped, tag = 'scoped memory for tpu_custom_call.1']
    #allocation5 [shape = 'u8[32768]{0}', space=vmem, size = 0x8000, scoped, tag = 'input window, operand 1, single buffered']
    #allocation6 [shape = 's32[1]{0}', space=sflag, size = 0x4, scoped, tag = 'scoped memory for tpu_custom_call.1']
    #allocation7 [shape = 'u8[32768]{0}', space=vmem, size = 0x8000, scoped, tag = 'input window, operand 2, single buffered']
    #allocation8 [shape = 'u8[32768]{0}', space=vmem, size = 0x8000, scoped, tag = 'output window, operand 0, single buffered']
    %8 = vsyncpa [#allocation3], 0
    %9 = vsyncpa [#allocation6], 0
    %10 = vsyncpa [#allocation4], 0
    // Predicated region
    $region2: #{tpu_custom_call.1} parent=1 // pred_check
      _
    $region3: #{tpu_custom_call.1} parent=1 // pred_check_branch
      %12 = sbr.rel (0) target = $region5
    $region4: #{tpu_custom_call.1} parent=1 // pred_region
      %14 = vsyncadd [#allocation3], 0
      %s15 = sshll.u32 %s0, 4
      %s16 = int_to_ptr.hbm [resolvable:$true] %s15
      %s17 = sshll.u32 [#allocation2], 4
      %s18 = int_to_ptr.vmem [resolvable:$true] %s17
      %23 = dma.hbm_to_vmem [thread:$0]  %s16, 1024, %s18, [#allocation3], 128, 128, 8
    $region5: #{tpu_custom_call.1} parent=1 // pred_fallthru
      _
    // Predicated region
    $region6: #{tpu_custom_call.1} parent=1 // pred_check
      _
    $region7: #{tpu_custom_call.1} parent=1 // pred_check_branch
      %25 = sbr.rel (0) target = $region9
    $region8: #{tpu_custom_call.1} parent=1 // pred_region
      %27 = vsyncadd [#allocation6], 0
      %s28 = sshll.u32 %s1, 4
      %s29 = int_to_ptr.hbm [resolvable:$true] %s28
      %s30 = sshll.u32 [#allocation5], 4
      %s31 = int_to_ptr.vmem [resolvable:$true] %s30
      %36 = dma.hbm_to_vmem [thread:$0]  %s29, 1024, %s31, [#allocation6], 128, 128, 8
    $region9: #{tpu_custom_call.1} parent=1 // pred_fallthru
      _
    // Predicated region
    $region10: #{tpu_custom_call.1} parent=1 // pred_check
      _
    $region11: #{tpu_custom_call.1} parent=1 // pred_check_branch
      %38 = sbr.rel (0) target = $region13
    $region12: #{tpu_custom_call.1} parent=1 // pred_region
      %40 = vsyncadd [#allocation6], 0
      %s41 = sshll.u32 %s2, 4
      %s42 = int_to_ptr.hbm [resolvable:$true] %s41
      %s43 = sshll.u32 [#allocation7], 4
      %s44 = int_to_ptr.vmem [resolvable:$true] %s43
      %49 = dma.hbm_to_vmem [thread:$0]  %s42, 1024, %s44, [#allocation6], 128, 128, 8
    $region13: #{tpu_custom_call.1} parent=1 // pred_fallthru
      _
    // Predicated region
    $region14: #{tpu_custom_call.1} parent=1 // pred_check
      _
    $region15: #{tpu_custom_call.1} parent=1 // pred_check_branch
      %51 = sbr.rel (0) target = $region17
    $region16: #{tpu_custom_call.1} parent=1 // pred_region
      %53 = dma.done [#allocation3], 1024
    $region17: #{tpu_custom_call.1} parent=1 // pred_fallthru
      _
    // Predicated region
    $region18: #{tpu_custom_call.1} parent=1 // pred_check
      _
    $region19: #{tpu_custom_call.1} parent=1 // pred_check_branch
      %55 = sbr.rel (0) target = $region21
    $region20: #{tpu_custom_call.1} parent=1 // pred_region
      %57 = dma.done [#allocation6], 1024
    $region21: #{tpu_custom_call.1} parent=1 // pred_fallthru
      _
    // Predicated region
    $region22: #{tpu_custom_call.1} parent=1 // pred_check
      _
    $region23: #{tpu_custom_call.1} parent=1 // pred_check_branch
      %59 = sbr.rel (0) target = $region25
    $region24: #{tpu_custom_call.1} parent=1 // pred_region
      %61 = dma.done [#allocation6], 1024
    $region25: #{tpu_custom_call.1} parent=1 // pred_fallthru
      _
    %v62 = vld [vmem:[#allocation2] sm:$0xff]
    %v63 = vld [vmem:[#allocation2 + $0x8] sm:$0xff]
    %v64 = vld [vmem:[#allocation2 + $0x10] sm:$0xff]
    %v65 = vld [vmem:[#allocation2 + $0x18] sm:$0xff]
    %v66 = vld [vmem:[#allocation2 + $0x20] sm:$0xff]
    %v67 = vld [vmem:[#allocation2 + $0x28] sm:$0xff]
    %v68 = vld [vmem:[#allocation2 + $0x30] sm:$0xff]
    %v69 = vld [vmem:[#allocation2 + $0x38] sm:$0xff]
    %v70 = vmul.f32 %v62, 0.35355338
    %v71 = vmul.f32 %v63, 0.35355338
    %v72 = vmul.f32 %v64, 0.35355338
    %v73 = vmul.f32 %v65, 0.35355338
    %v74 = vmul.f32 %v66, 0.35355338
    %v75 = vmul.f32 %v67, 0.35355338
    %v76 = vmul.f32 %v68, 0.35355338
    %v77 = vmul.f32 %v69, 0.35355338
    %v78 = vld [vmem:[#allocation5] sm:$0xff]
    %v79 = vld [vmem:[#allocation5 + $0x8] sm:$0xff]
    %v80 = vld [vmem:[#allocation5 + $0x10] sm:$0xff]
    %v81 = vld [vmem:[#allocation5 + $0x18] sm:$0xff]
    %v82 = vld [vmem:[#allocation5 + $0x20] sm:$0xff]
    %v83 = vld [vmem:[#allocation5 + $0x28] sm:$0xff]
    %v84 = vld [vmem:[#allocation5 + $0x30] sm:$0xff]
    %v85 = vld [vmem:[#allocation5 + $0x38] sm:$0xff]
    %vm86 = vcmask 64512
    %v88 = vsel %vm86, %v70, 0
    %v91 = vsel %vm86, %v78, 0
    %93 = vmatpush.xpose.msra.mxu0 0.0
    %94 = vmatpush.xpose.msra.mxu0 0.0
    %95 = vmatpush.xpose.msra.mxu0 0.0
    %96 = vmatpush.xpose.msra.mxu0 0.0
    %97 = vmatpush.xpose.msra.mxu0 0.0
    %98 = vmatpush.xpose.msra.mxu0 0.0
    %99 = vmatpush.xpose.msra.mxu0 0.0
    %100 = vmatpush.xpose.msra.mxu0 0.0
    %101 = vmatpush.xpose.msra.mxu0 0.0
    %102 = vmatpush.xpose.msra.mxu0 0.0
    %103 = vmatpush.xpose.msra.mxu0 0.0
    %104 = vmatpush.xpose.msra.mxu0 0.0
    %105 = vmatpush.xpose.msra.mxu0 0.0
    %106 = vmatpush.xpose.msra.mxu0 0.0
    %107 = vmatpush.xpose.msra.mxu0 0.0
    %108 = vmatpush.xpose.msra.mxu0 %v91
    %109 = vmatmul.f32.gmra.mxu0 %v88
    %v110 = vpop.f32.mrf.mxu0
    %v111 = vadd.f32 0.0, %v110
    %112 = vdwg.mxu0
    %v114 = vsel %vm86, %v71, 0
    %v117 = vsel %vm86, %v79, 0
    %119 = vmatpush.xpose.msra.mxu0 0.0
    %120 = vmatpush.xpose.msra.mxu0 0.0
    %121 = vmatpush.xpose.msra.mxu0 0.0
    %122 = vmatpush.xpose.msra.mxu0 0.0
    %123 = vmatpush.xpose.msra.mxu0 0.0
    %124 = vmatpush.xpose.msra.mxu0 0.0
    %125 = vmatpush.xpose.msra.mxu0 0.0
    %126 = vmatpush.xpose.msra.mxu0 0.0
    %127 = vmatpush.xpose.msra.mxu0 0.0
    %128 = vmatpush.xpose.msra.mxu0 0.0
    %129 = vmatpush.xpose.msra.mxu0 0.0
    %130 = vmatpush.xpose.msra.mxu0 0.0
    %131 = vmatpush.xpose.msra.mxu0 0.0
    %132 = vmatpush.xpose.msra.mxu0 0.0
    %133 = vmatpush.xpose.msra.mxu0 0.0
    %134 = vmatpush.xpose.msra.mxu0 %v117
    %135 = vmatmul.f32.gmra.mxu0 %v114
    %v136 = vpop.f32.mrf.mxu0
    %v137 = vadd.f32 0.0, %v136
    %138 = vdwg.mxu0
    %v140 = vsel %vm86, %v72, 0
    %v143 = vsel %vm86, %v80, 0
    %145 = vmatpush.xpose.msra.mxu0 0.0
    %146 = vmatpush.xpose.msra.mxu0 0.0
    %147 = vmatpush.xpose.msra.mxu0 0.0
    %148 = vmatpush.xpose.msra.mxu0 0.0
    %149 = vmatpush.xpose.msra.mxu0 0.0
    %150 = vmatpush.xpose.msra.mxu0 0.0
    %151 = vmatpush.xpose.msra.mxu0 0.0
    %152 = vmatpush.xpose.msra.mxu0 0.0
    %153 = vmatpush.xpose.msra.mxu0 0.0
    %154 = vmatpush.xpose.msra.mxu0 0.0
    %155 = vmatpush.xpose.msra.mxu0 0.0
    %156 = vmatpush.xpose.msra.mxu0 0.0
    %157 = vmatpush.xpose.msra.mxu0 0.0
    %158 = vmatpush.xpose.msra.mxu0 0.0
    %159 = vmatpush.xpose.msra.mxu0 0.0
    %160 = vmatpush.xpose.msra.mxu0 %v143
    %161 = vmatmul.f32.gmra.mxu0 %v140
    %v162 = vpop.f32.mrf.mxu0
    %v163 = vadd.f32 0.0, %v162
    %164 = vdwg.mxu0
    %v166 = vsel %vm86, %v73, 0
    %v169 = vsel %vm86, %v81, 0
    %171 = vmatpush.xpose.msra.mxu0 0.0
    %172 = vmatpush.xpose.msra.mxu0 0.0
    %173 = vmatpush.xpose.msra.mxu0 0.0
    %174 = vmatpush.xpose.msra.mxu0 0.0
    %175 = vmatpush.xpose.msra.mxu0 0.0
    %176 = vmatpush.xpose.msra.mxu0 0.0
    %177 = vmatpush.xpose.msra.mxu0 0.0
    %178 = vmatpush.xpose.msra.mxu0 0.0
    %179 = vmatpush.xpose.msra.mxu0 0.0
    %180 = vmatpush.xpose.msra.mxu0 0.0
    %181 = vmatpush.xpose.msra.mxu0 0.0
    %182 = vmatpush.xpose.msra.mxu0 0.0
    %183 = vmatpush.xpose.msra.mxu0 0.0
    %184 = vmatpush.xpose.msra.mxu0 0.0
    %185 = vmatpush.xpose.msra.mxu0 0.0
    %186 = vmatpush.xpose.msra.mxu0 %v169
    %187 = vmatmul.f32.gmra.mxu0 %v166
    %v188 = vpop.f32.mrf.mxu0
    %v189 = vadd.f32 0.0, %v188
    %190 = vdwg.mxu0
    %v192 = vsel %vm86, %v74, 0
    %v195 = vsel %vm86, %v82, 0
    %197 = vmatpush.xpose.msra.mxu0 0.0
    %198 = vmatpush.xpose.msra.mxu0 0.0
    %199 = vmatpush.xpose.msra.mxu0 0.0
    %200 = vmatpush.xpose.msra.mxu0 0.0
    %201 = vmatpush.xpose.msra.mxu0 0.0
    %202 = vmatpush.xpose.msra.mxu0 0.0
    %203 = vmatpush.xpose.msra.mxu0 0.0
    %204 = vmatpush.xpose.msra.mxu0 0.0
    %205 = vmatpush.xpose.msra.mxu0 0.0
    %206 = vmatpush.xpose.msra.mxu0 0.0
    %207 = vmatpush.xpose.msra.mxu0 0.0
    %208 = vmatpush.xpose.msra.mxu0 0.0
    %209 = vmatpush.xpose.msra.mxu0 0.0
    %210 = vmatpush.xpose.msra.mxu0 0.0
    %211 = vmatpush.xpose.msra.mxu0 0.0
    %212 = vmatpush.xpose.msra.mxu0 %v195
    %213 = vmatmul.f32.gmra.mxu0 %v192
    %v214 = vpop.f32.mrf.mxu0
    %v215 = vadd.f32 0.0, %v214
    %216 = vdwg.mxu0
    %v218 = vsel %vm86, %v75, 0
    %v221 = vsel %vm86, %v83, 0
    %223 = vmatpush.xpose.msra.mxu0 0.0
    %224 = vmatpush.xpose.msra.mxu0 0.0
    %225 = vmatpush.xpose.msra.mxu0 0.0
    %226 = vmatpush.xpose.msra.mxu0 0.0
    %227 = vmatpush.xpose.msra.mxu0 0.0
    %228 = vmatpush.xpose.msra.mxu0 0.0
    %229 = vmatpush.xpose.msra.mxu0 0.0
    %230 = vmatpush.xpose.msra.mxu0 0.0
    %231 = vmatpush.xpose.msra.mxu0 0.0
    %232 = vmatpush.xpose.msra.mxu0 0.0
    %233 = vmatpush.xpose.msra.mxu0 0.0
    %234 = vmatpush.xpose.msra.mxu0 0.0
    %235 = vmatpush.xpose.msra.mxu0 0.0
    %236 = vmatpush.xpose.msra.mxu0 0.0
    %237 = vmatpush.xpose.msra.mxu0 0.0
    %238 = vmatpush.xpose.msra.mxu0 %v221
    %239 = vmatmul.f32.gmra.mxu0 %v218
    %v240 = vpop.f32.mrf.mxu0
    %v241 = vadd.f32 0.0, %v240
    %242 = vdwg.mxu0
    %v244 = vsel %vm86, %v76, 0
    %v247 = vsel %vm86, %v84, 0
    %249 = vmatpush.xpose.msra.mxu0 0.0
    %250 = vmatpush.xpose.msra.mxu0 0.0
    %251 = vmatpush.xpose.msra.mxu0 0.0
    %252 = vmatpush.xpose.msra.mxu0 0.0
    %253 = vmatpush.xpose.msra.mxu0 0.0
    %254 = vmatpush.xpose.msra.mxu0 0.0
    %255 = vmatpush.xpose.msra.mxu0 0.0
    %256 = vmatpush.xpose.msra.mxu0 0.0
    %257 = vmatpush.xpose.msra.mxu0 0.0
    %258 = vmatpush.xpose.msra.mxu0 0.0
    %259 = vmatpush.xpose.msra.mxu0 0.0
    %260 = vmatpush.xpose.msra.mxu0 0.0
    %261 = vmatpush.xpose.msra.mxu0 0.0
    %262 = vmatpush.xpose.msra.mxu0 0.0
    %263 = vmatpush.xpose.msra.mxu0 0.0
    %264 = vmatpush.xpose.msra.mxu0 %v247
    %265 = vmatmul.f32.gmra.mxu0 %v244
    %v266 = vpop.f32.mrf.mxu0
    %v267 = vadd.f32 0.0, %v266
    %268 = vdwg.mxu0
    %v270 = vsel %vm86, %v77, 0
    %v273 = vsel %vm86, %v85, 0
    %275 = vmatpush.xpose.msra.mxu0 0.0
    %276 = vmatpush.xpose.msra.mxu0 0.0
    %277 = vmatpush.xpose.msra.mxu0 0.0
    %278 = vmatpush.xpose.msra.mxu0 0.0
    %279 = vmatpush.xpose.msra.mxu0 0.0
    %280 = vmatpush.xpose.msra.mxu0 0.0
    %281 = vmatpush.xpose.msra.mxu0 0.0
    %282 = vmatpush.xpose.msra.mxu0 0.0
    %283 = vmatpush.xpose.msra.mxu0 0.0
    %284 = vmatpush.xpose.msra.mxu0 0.0
    %285 = vmatpush.xpose.msra.mxu0 0.0
    %286 = vmatpush.xpose.msra.mxu0 0.0
    %287 = vmatpush.xpose.msra.mxu0 0.0
    %288 = vmatpush.xpose.msra.mxu0 0.0
    %289 = vmatpush.xpose.msra.mxu0 0.0
    %290 = vmatpush.xpose.msra.mxu0 %v273
    %291 = vmatmul.f32.gmra.mxu0 %v270
    %v292 = vpop.f32.mrf.mxu0
    %v293 = vadd.f32 0.0, %v292
    %294 = vdwg.mxu0
    %v295 = vsel %vm86, %v111, -inf
    %296 = vmax.xlane.f32.xlu0 %v295
    %v297 = vpop.xlane.xlu0 %296
    %v298 = vsel %vm86, %v137, -inf
    %299 = vmax.xlane.f32.xlu0 %v298
    %v300 = vpop.xlane.xlu0 %299
    %v301 = vsel %vm86, %v163, -inf
    %302 = vmax.xlane.f32.xlu0 %v301
    %v303 = vpop.xlane.xlu0 %302
    %v304 = vsel %vm86, %v189, -inf
    %305 = vmax.xlane.f32.xlu0 %v304
    %v306 = vpop.xlane.xlu0 %305
    %v307 = vsel %vm86, %v215, -inf
    %308 = vmax.xlane.f32.xlu0 %v307
    %v309 = vpop.xlane.xlu0 %308
    %v310 = vsel %vm86, %v241, -inf
    %311 = vmax.xlane.f32.xlu0 %v310
    %v312 = vpop.xlane.xlu0 %311
    %v313 = vsel %vm86, %v267, -inf
    %314 = vmax.xlane.f32.xlu0 %v313
    %v315 = vpop.xlane.xlu0 %314
    %v316 = vsel %vm86, %v293, -inf
    %317 = vmax.xlane.f32.xlu0 %v316
    %v318 = vpop.xlane.xlu0 %317
    %v319 = vsub.f32 %v111, %v297
    %v320 = vsub.f32 %v137, %v300
    %v321 = vsub.f32 %v163, %v303
    %v322 = vsub.f32 %v189, %v306
    %v323 = vsub.f32 %v215, %v309
    %v324 = vsub.f32 %v241, %v312
    %v325 = vsub.f32 %v267, %v315
    %v326 = vsub.f32 %v293, %v318
    %v327 = vmul.f32 %v319, 1.442695
    %v328 = vpow.pop %v327
    %v329 = vmul.f32 %v320, 1.442695
    %v330 = vpow.pop %v329
    %v331 = vmul.f32 %v321, 1.442695
    %v332 = vpow.pop %v331
    %v333 = vmul.f32 %v322, 1.442695
    %v334 = vpow.pop %v333
    %v335 = vmul.f32 %v323, 1.442695
    %v336 = vpow.pop %v335
    %v337 = vmul.f32 %v324, 1.442695
    %v338 = vpow.pop %v337
    %v339 = vmul.f32 %v325, 1.442695
    %v340 = vpow.pop %v339
    %v341 = vmul.f32 %v326, 1.442695
    %v342 = vpow.pop %v341
    %v343 = vsel %vm86, %v328, 0.0
    %344 = vadd.xlane.f32.xlu0 %v343
    %v345 = vpop.xlane.xlu0 %344
    %v346 = vsel %vm86, %v330, 0.0
    %347 = vadd.xlane.f32.xlu0 %v346
    %v348 = vpop.xlane.xlu0 %347
    %v349 = vsel %vm86, %v332, 0.0
    %350 = vadd.xlane.f32.xlu0 %v349
    %v351 = vpop.xlane.xlu0 %350
    %v352 = vsel %vm86, %v334, 0.0
    %353 = vadd.xlane.f32.xlu0 %v352
    %v354 = vpop.xlane.xlu0 %353
    %v355 = vsel %vm86, %v336, 0.0
    %356 = vadd.xlane.f32.xlu0 %v355
    %v357 = vpop.xlane.xlu0 %356
    %v358 = vsel %vm86, %v338, 0.0
    %359 = vadd.xlane.f32.xlu0 %v358
    %v360 = vpop.xlane.xlu0 %359
    %v361 = vsel %vm86, %v340, 0.0
    %362 = vadd.xlane.f32.xlu0 %v361
    %v363 = vpop.xlane.xlu0 %362
    %v364 = vsel %vm86, %v342, 0.0
    %365 = vadd.xlane.f32.xlu0 %v364
    %v366 = vpop.xlane.xlu0 %365
    %v367 = vsub.f32 0.0, %v297
    %v368 = vsub.f32 0.0, %v300
    %v369 = vsub.f32 0.0, %v303
    %v370 = vsub.f32 0.0, %v306
    %v371 = vsub.f32 0.0, %v309
    %v372 = vsub.f32 0.0, %v312
    %v373 = vsub.f32 0.0, %v315
    %v374 = vsub.f32 0.0, %v318
    %v375 = vmul.f32 %v367, 1.442695
    %v376 = vpow.pop %v375
    %v377 = vmul.f32 %v368, 1.442695
    %v378 = vpow.pop %v377
    %v379 = vmul.f32 %v369, 1.442695
    %v380 = vpow.pop %v379
    %v381 = vmul.f32 %v370, 1.442695
    %v382 = vpow.pop %v381
    %v383 = vmul.f32 %v371, 1.442695
    %v384 = vpow.pop %v383
    %v385 = vmul.f32 %v372, 1.442695
    %v386 = vpow.pop %v385
    %v387 = vmul.f32 %v373, 1.442695
    %v388 = vpow.pop %v387
    %v389 = vmul.f32 %v374, 1.442695
    %v390 = vpow.pop %v389
    %v391 = vmax.f32 %v345, %v376
    %v392 = vmax.f32 %v348, %v378
    %v393 = vmax.f32 %v351, %v380
    %v394 = vmax.f32 %v354, %v382
    %v395 = vmax.f32 %v357, %v384
    %v396 = vmax.f32 %v360, %v386
    %v397 = vmax.f32 %v363, %v388
    %v398 = vmax.f32 %v366, %v390
    %v399 = vrcp.pop %v391
    %v400 = vmul.f32 %v391, %v399
    %v401 = vsub.f32 1.0, %v400
    %v402 = vmul.f32 %v399, %v401
    %v403 = vadd.f32 %v399, %v402
    %vm404 = vweird.f32 %v391
    %vm405 = vweird.f32 %v399
    %vm406 = vmor %vm404, %vm405
    %v407 = vsel %vm406, %v399, %v403
    %v408 = vand.u32 2147483647, %v391
    %vm409 = vcmp.eq.f32.partialorder %v408, 8.507059e+37
    %v410 = vand.u32 %v391, 2147483648
    %v411 = vor.u32 1.1754944e-38, %v410
    %v412 = vsel %vm409, %v411, %v407
    %v413 = vrcp.pop %v392
    %v414 = vmul.f32 %v392, %v413
    %v415 = vsub.f32 1.0, %v414
    %v416 = vmul.f32 %v413, %v415
    %v417 = vadd.f32 %v413, %v416
    %vm418 = vweird.f32 %v392
    %vm419 = vweird.f32 %v413
    %vm420 = vmor %vm418, %vm419
    %v421 = vsel %vm420, %v413, %v417
    %v422 = vand.u32 2147483647, %v392
    %vm423 = vcmp.eq.f32.partialorder %v422, 8.507059e+37
    %v424 = vand.u32 %v392, 2147483648
    %v425 = vor.u32 1.1754944e-38, %v424
    %v426 = vsel %vm423, %v425, %v421
    %v427 = vrcp.pop %v393
    %v428 = vmul.f32 %v393, %v427
    %v429 = vsub.f32 1.0, %v428
    %v430 = vmul.f32 %v427, %v429
    %v431 = vadd.f32 %v427, %v430
    %vm432 = vweird.f32 %v393
    %vm433 = vweird.f32 %v427
    %vm434 = vmor %vm432, %vm433
    %v435 = vsel %vm434, %v427, %v431
    %v436 = vand.u32 2147483647, %v393
    %vm437 = vcmp.eq.f32.partialorder %v436, 8.507059e+37
    %v438 = vand.u32 %v393, 2147483648
    %v439 = vor.u32 1.1754944e-38, %v438
    %v440 = vsel %vm437, %v439, %v435
    %v441 = vrcp.pop %v394
    %v442 = vmul.f32 %v394, %v441
    %v443 = vsub.f32 1.0, %v442
    %v444 = vmul.f32 %v441, %v443
    %v445 = vadd.f32 %v441, %v444
    %vm446 = vweird.f32 %v394
    %vm447 = vweird.f32 %v441
    %vm448 = vmor %vm446, %vm447
    %v449 = vsel %vm448, %v441, %v445
    %v450 = vand.u32 2147483647, %v394
    %vm451 = vcmp.eq.f32.partialorder %v450, 8.507059e+37
    %v452 = vand.u32 %v394, 2147483648
    %v453 = vor.u32 1.1754944e-38, %v452
    %v454 = vsel %vm451, %v453, %v449
    %v455 = vrcp.pop %v395
    %v456 = vmul.f32 %v395, %v455
    %v457 = vsub.f32 1.0, %v456
    %v458 = vmul.f32 %v455, %v457
    %v459 = vadd.f32 %v455, %v458
    %vm460 = vweird.f32 %v395
    %vm461 = vweird.f32 %v455
    %vm462 = vmor %vm460, %vm461
    %v463 = vsel %vm462, %v455, %v459
    %v464 = vand.u32 2147483647, %v395
    %vm465 = vcmp.eq.f32.partialorder %v464, 8.507059e+37
    %v466 = vand.u32 %v395, 2147483648
    %v467 = vor.u32 1.1754944e-38, %v466
    %v468 = vsel %vm465, %v467, %v463
    %v469 = vrcp.pop %v396
    %v470 = vmul.f32 %v396, %v469
    %v471 = vsub.f32 1.0, %v470
    %v472 = vmul.f32 %v469, %v471
    %v473 = vadd.f32 %v469, %v472
    %vm474 = vweird.f32 %v396
    %vm475 = vweird.f32 %v469
    %vm476 = vmor %vm474, %vm475
    %v477 = vsel %vm476, %v469, %v473
    %v478 = vand.u32 2147483647, %v396
    %vm479 = vcmp.eq.f32.partialorder %v478, 8.507059e+37
    %v480 = vand.u32 %v396, 2147483648
    %v481 = vor.u32 1.1754944e-38, %v480
    %v482 = vsel %vm479, %v481, %v477
    %v483 = vrcp.pop %v397
    %v484 = vmul.f32 %v397, %v483
    %v485 = vsub.f32 1.0, %v484
    %v486 = vmul.f32 %v483, %v485
    %v487 = vadd.f32 %v483, %v486
    %vm488 = vweird.f32 %v397
    %vm489 = vweird.f32 %v483
    %vm490 = vmor %vm488, %vm489
    %v491 = vsel %vm490, %v483, %v487
    %v492 = vand.u32 2147483647, %v397
    %vm493 = vcmp.eq.f32.partialorder %v492, 8.507059e+37
    %v494 = vand.u32 %v397, 2147483648
    %v495 = vor.u32 1.1754944e-38, %v494
    %v496 = vsel %vm493, %v495, %v491
    %v497 = vrcp.pop %v398
    %v498 = vmul.f32 %v398, %v497
    %v499 = vsub.f32 1.0, %v498
    %v500 = vmul.f32 %v497, %v499
    %v501 = vadd.f32 %v497, %v500
    %vm502 = vweird.f32 %v398
    %vm503 = vweird.f32 %v497
    %vm504 = vmor %vm502, %vm503
    %v505 = vsel %vm504, %v497, %v501
    %v506 = vand.u32 2147483647, %v398
    %vm507 = vcmp.eq.f32.partialorder %v506, 8.507059e+37
    %v508 = vand.u32 %v398, 2147483648
    %v509 = vor.u32 1.1754944e-38, %v508
    %v510 = vsel %vm507, %v509, %v505
    %v511 = vld [vmem:[#allocation7] sm:$0xff]
    %v512 = vld [vmem:[#allocation7 + $0x8] sm:$0xff]
    %v513 = vld [vmem:[#allocation7 + $0x10] sm:$0xff]
    %v514 = vld [vmem:[#allocation7 + $0x18] sm:$0xff]
    %v515 = vld [vmem:[#allocation7 + $0x20] sm:$0xff]
    %v516 = vld [vmem:[#allocation7 + $0x28] sm:$0xff]
    %v517 = vld [vmem:[#allocation7 + $0x30] sm:$0xff]
    %v518 = vld [vmem:[#allocation7 + $0x38] sm:$0xff]
    %v520 = vsel %vm86, %v328, 0
    %522 = vmatpush.msra.mxu0 0.0
    %523 = vmatpush.msra.mxu0 0.0
    %524 = vmatpush.msra.mxu0 0.0
    %525 = vmatpush.msra.mxu0 0.0
    %526 = vmatpush.msra.mxu0 0.0
    %527 = vmatpush.msra.mxu0 0.0
    %528 = vmatpush.msra.mxu0 0.0
    %529 = vmatpush.msra.mxu0 0.0
    %530 = vmatpush.msra.mxu0 0.0
    %531 = vmatpush.msra.mxu0 0.0
    %532 = vmatpush.msra.mxu0 0.0
    %533 = vmatpush.msra.mxu0 0.0
    %534 = vmatpush.msra.mxu0 0.0
    %535 = vmatpush.msra.mxu0 0.0
    %536 = vmatpush.msra.mxu0 0.0
    %537 = vmatpush.msra.mxu0 %v511
    %538 = vmatmul.f32.gmra.mxu0 %v520
    %v539 = vpop.f32.mrf.mxu0
    %v540 = vadd.f32 0.0, %v539
    %541 = vdwg.mxu0
    %v543 = vsel %vm86, %v330, 0
    %545 = vmatpush.msra.mxu0 0.0
    %546 = vmatpush.msra.mxu0 0.0
    %547 = vmatpush.msra.mxu0 0.0
    %548 = vmatpush.msra.mxu0 0.0
    %549 = vmatpush.msra.mxu0 0.0
    %550 = vmatpush.msra.mxu0 0.0
    %551 = vmatpush.msra.mxu0 0.0
    %552 = vmatpush.msra.mxu0 0.0
    %553 = vmatpush.msra.mxu0 0.0
    %554 = vmatpush.msra.mxu0 0.0
    %555 = vmatpush.msra.mxu0 0.0
    %556 = vmatpush.msra.mxu0 0.0
    %557 = vmatpush.msra.mxu0 0.0
    %558 = vmatpush.msra.mxu0 0.0
    %559 = vmatpush.msra.mxu0 0.0
    %560 = vmatpush.msra.mxu0 %v512
    %561 = vmatmul.f32.gmra.mxu0 %v543
    %v562 = vpop.f32.mrf.mxu0
    %v563 = vadd.f32 0.0, %v562
    %564 = vdwg.mxu0
    %v566 = vsel %vm86, %v332, 0
    %568 = vmatpush.msra.mxu0 0.0
    %569 = vmatpush.msra.mxu0 0.0
    %570 = vmatpush.msra.mxu0 0.0
    %571 = vmatpush.msra.mxu0 0.0
    %572 = vmatpush.msra.mxu0 0.0
    %573 = vmatpush.msra.mxu0 0.0
    %574 = vmatpush.msra.mxu0 0.0
    %575 = vmatpush.msra.mxu0 0.0
    %576 = vmatpush.msra.mxu0 0.0
    %577 = vmatpush.msra.mxu0 0.0
    %578 = vmatpush.msra.mxu0 0.0
    %579 = vmatpush.msra.mxu0 0.0
    %580 = vmatpush.msra.mxu0 0.0
    %581 = vmatpush.msra.mxu0 0.0
    %582 = vmatpush.msra.mxu0 0.0
    %583 = vmatpush.msra.mxu0 %v513
    %584 = vmatmul.f32.gmra.mxu0 %v566
    %v585 = vpop.f32.mrf.mxu0
    %v586 = vadd.f32 0.0, %v585
    %587 = vdwg.mxu0
    %v589 = vsel %vm86, %v334, 0
    %591 = vmatpush.msra.mxu0 0.0
    %592 = vmatpush.msra.mxu0 0.0
    %593 = vmatpush.msra.mxu0 0.0
    %594 = vmatpush.msra.mxu0 0.0
    %595 = vmatpush.msra.mxu0 0.0
    %596 = vmatpush.msra.mxu0 0.0
    %597 = vmatpush.msra.mxu0 0.0
    %598 = vmatpush.msra.mxu0 0.0
    %599 = vmatpush.msra.mxu0 0.0
    %600 = vmatpush.msra.mxu0 0.0
    %601 = vmatpush.msra.mxu0 0.0
    %602 = vmatpush.msra.mxu0 0.0
    %603 = vmatpush.msra.mxu0 0.0
    %604 = vmatpush.msra.mxu0 0.0
    %605 = vmatpush.msra.mxu0 0.0
    %606 = vmatpush.msra.mxu0 %v514
    %607 = vmatmul.f32.gmra.mxu0 %v589
    %v608 = vpop.f32.mrf.mxu0
    %v609 = vadd.f32 0.0, %v608
    %610 = vdwg.mxu0
    %v612 = vsel %vm86, %v336, 0
    %614 = vmatpush.msra.mxu0 0.0
    %615 = vmatpush.msra.mxu0 0.0
    %616 = vmatpush.msra.mxu0 0.0
    %617 = vmatpush.msra.mxu0 0.0
    %618 = vmatpush.msra.mxu0 0.0
    %619 = vmatpush.msra.mxu0 0.0
    %620 = vmatpush.msra.mxu0 0.0
    %621 = vmatpush.msra.mxu0 0.0
    %622 = vmatpush.msra.mxu0 0.0
    %623 = vmatpush.msra.mxu0 0.0
    %624 = vmatpush.msra.mxu0 0.0
    %625 = vmatpush.msra.mxu0 0.0
    %626 = vmatpush.msra.mxu0 0.0
    %627 = vmatpush.msra.mxu0 0.0
    %628 = vmatpush.msra.mxu0 0.0
    %629 = vmatpush.msra.mxu0 %v515
    %630 = vmatmul.f32.gmra.mxu0 %v612
    %v631 = vpop.f32.mrf.mxu0
    %v632 = vadd.f32 0.0, %v631
    %633 = vdwg.mxu0
    %v635 = vsel %vm86, %v338, 0
    %637 = vmatpush.msra.mxu0 0.0
    %638 = vmatpush.msra.mxu0 0.0
    %639 = vmatpush.msra.mxu0 0.0
    %640 = vmatpush.msra.mxu0 0.0
    %641 = vmatpush.msra.mxu0 0.0
    %642 = vmatpush.msra.mxu0 0.0
    %643 = vmatpush.msra.mxu0 0.0
    %644 = vmatpush.msra.mxu0 0.0
    %645 = vmatpush.msra.mxu0 0.0
    %646 = vmatpush.msra.mxu0 0.0
    %647 = vmatpush.msra.mxu0 0.0
    %648 = vmatpush.msra.mxu0 0.0
    %649 = vmatpush.msra.mxu0 0.0
    %650 = vmatpush.msra.mxu0 0.0
    %651 = vmatpush.msra.mxu0 0.0
    %652 = vmatpush.msra.mxu0 %v516
    %653 = vmatmul.f32.gmra.mxu0 %v635
    %v654 = vpop.f32.mrf.mxu0
    %v655 = vadd.f32 0.0, %v654
    %656 = vdwg.mxu0
    %v658 = vsel %vm86, %v340, 0
    %660 = vmatpush.msra.mxu0 0.0
    %661 = vmatpush.msra.mxu0 0.0
    %662 = vmatpush.msra.mxu0 0.0
    %663 = vmatpush.msra.mxu0 0.0
    %664 = vmatpush.msra.mxu0 0.0
    %665 = vmatpush.msra.mxu0 0.0
    %666 = vmatpush.msra.mxu0 0.0
    %667 = vmatpush.msra.mxu0 0.0
    %668 = vmatpush.msra.mxu0 0.0
    %669 = vmatpush.msra.mxu0 0.0
    %670 = vmatpush.msra.mxu0 0.0
    %671 = vmatpush.msra.mxu0 0.0
    %672 = vmatpush.msra.mxu0 0.0
    %673 = vmatpush.msra.mxu0 0.0
    %674 = vmatpush.msra.mxu0 0.0
    %675 = vmatpush.msra.mxu0 %v517
    %676 = vmatmul.f32.gmra.mxu0 %v658
    %v677 = vpop.f32.mrf.mxu0
    %v678 = vadd.f32 0.0, %v677
    %679 = vdwg.mxu0
    %v681 = vsel %vm86, %v342, 0
    %683 = vmatpush.msra.mxu0 0.0
    %684 = vmatpush.msra.mxu0 0.0
    %685 = vmatpush.msra.mxu0 0.0
    %686 = vmatpush.msra.mxu0 0.0
    %687 = vmatpush.msra.mxu0 0.0
    %688 = vmatpush.msra.mxu0 0.0
    %689 = vmatpush.msra.mxu0 0.0
    %690 = vmatpush.msra.mxu0 0.0
    %691 = vmatpush.msra.mxu0 0.0
    %692 = vmatpush.msra.mxu0 0.0
    %693 = vmatpush.msra.mxu0 0.0
    %694 = vmatpush.msra.mxu0 0.0
    %695 = vmatpush.msra.mxu0 0.0
    %696 = vmatpush.msra.mxu0 0.0
    %697 = vmatpush.msra.mxu0 0.0
    %698 = vmatpush.msra.mxu0 %v518
    %699 = vmatmul.f32.gmra.mxu0 %v681
    %v700 = vpop.f32.mrf.mxu0
    %v701 = vadd.f32 0.0, %v700
    %702 = vdwg.mxu0
    %v703 = vmul.f32 %v540, %v412
    %v704 = vmul.f32 %v563, %v426
    %v705 = vmul.f32 %v586, %v440
    %v706 = vmul.f32 %v609, %v454
    %v707 = vmul.f32 %v632, %v468
    %v708 = vmul.f32 %v655, %v482
    %v709 = vmul.f32 %v678, %v496
    %v710 = vmul.f32 %v701, %v510
    %711 = vst.msk [vmem:[#allocation8] sm:$0xff] %vm86, %v703
    %712 = vst.msk [vmem:[#allocation8 + $0x8] sm:$0xff] %vm86, %v704
    %713 = vst.msk [vmem:[#allocation8 + $0x10] sm:$0xff] %vm86, %v705
    %714 = vst.msk [vmem:[#allocation8 + $0x18] sm:$0xff] %vm86, %v706
    %715 = vst.msk [vmem:[#allocation8 + $0x20] sm:$0xff] %vm86, %v707
    %716 = vst.msk [vmem:[#allocation8 + $0x28] sm:$0xff] %vm86, %v708
    %717 = vst.msk [vmem:[#allocation8 + $0x30] sm:$0xff] %vm86, %v709
    %718 = vst.msk [vmem:[#allocation8 + $0x38] sm:$0xff] %vm86, %v710
    // Predicated region
    $region26: #{tpu_custom_call.1} parent=1 // pred_check
      _
    $region27: #{tpu_custom_call.1} parent=1 // pred_check_branch
      %720 = sbr.rel (0) target = $region29
    $region28: #{tpu_custom_call.1} parent=1 // pred_region
      %722 = vsyncadd [#allocation4], 0
      %s723 = sshll.u32 [#allocation8], 4
      %s724 = int_to_ptr.vmem [resolvable:$true] %s723
      %s725 = sshll.u32 %s3, 4
      %s726 = int_to_ptr.hbm [resolvable:$true] %s725
      %731 = dma.vmem_to_hbm [thread:$0]  %s724, 1024, %s726, [#allocation4], 128, 128, 8
    $region29: #{tpu_custom_call.1} parent=1 // pred_fallthru
      _
    // Predicated region
    $region30: #{tpu_custom_call.1} parent=1 // pred_check
      _
    $region31: #{tpu_custom_call.1} parent=1 // pred_check_branch
      %733 = sbr.rel (0) target = $region33
    $region32: #{tpu_custom_call.1} parent=1 // pred_region
      %735 = dma.done [#allocation4], 1024
    $region33: #{tpu_custom_call.1} parent=1 // pred_fallthru
      _
    %736 = vsyncpa [#allocation3], 1
    %737 = vsyncpa [#allocation6], 1
    %738 = vsyncpa [#allocation4], 1

</llo_original>
